<compile_context>
chip_gen: v7x
topology: tpu7x:2x2x1
jax: 0.10.0
libtpu: 0.0.40
codegen_flags: <defaults>
</compile_context>

<pallas_src>
import jax
import jax.numpy as jnp
from jax.experimental import pallas as pl
from jax.experimental.pallas import tpu as pltpu


# ---------------------------------------------------------------------------
# Small helpers
# ---------------------------------------------------------------------------
def _i32c(v):
    """Python int -> wrapped signed int32 constant."""
    v = int(v) & 0xFFFFFFFF
    if v >= 0x80000000:
        v -= 0x100000000
    return jnp.int32(v)


def _lsr(x, k):
    """Logical right shift on int32 (arithmetic shift + mask off sign bits)."""
    return jnp.bitwise_and(jnp.right_shift(x, k), (1 << (32 - k)) - 1)


def _vmem_cap_bytes():
    """Physical VMEM per core; safe 64 MiB fallback (v7x-sized) off-TPU."""
    try:
        return int(pltpu.get_tpu_info().vmem_capacity_bytes)
    except Exception:
        return 64 * 1024 * 1024


# ---------------------------------------------------------------------------
# Kernel
# ---------------------------------------------------------------------------
def _make_mlp_kernel(use_dropout, p_drop, seed, tile_b, hidden):
    # keep iff hash24 >= thresh  =>  keep prob ~= 1 - p  (24-bit resolution)
    thresh24 = int(round(float(p_drop) * (1 << 24)))
    seed_mix = (int(seed) * 0x9E3779B9 + 0x6A09E667) & 0xFFFFFFFF

    def kernel(x_ref, w1_ref, b1_ref, w2_ref, b2_ref, out_ref):
        # ---- layer 1: bf16 operands on the MXU, f32 accumulation ----
        h = jnp.dot(x_ref[...].astype(jnp.bfloat16), w1_ref[...],
                    preferred_element_type=jnp.float32)
        h = jnp.maximum(h + b1_ref[...], 0.0)          # bias + ReLU in f32

        if use_dropout:
            # Counter-based hash (lowbias32 mixer) keyed on the *global*
            # (row, col) so the mask does not depend on the tiling.
            row0 = pl.program_id(0) * tile_b
            r = jax.lax.broadcasted_iota(jnp.int32, h.shape, 0) + row0
            c = jax.lax.broadcasted_iota(jnp.int32, h.shape, 1)
            v = r * _i32c(hidden) + c
            v = v ^ _i32c(seed_mix)
            v = v ^ _lsr(v, 16)
            v = v * _i32c(0x7FEB352D)
            v = v ^ _lsr(v, 15)
            v = v * _i32c(0x846CA68B)
            v = v ^ _lsr(v, 16)
            bits = jnp.bitwise_and(v, (1 << 24) - 1)    # uniform in [0, 2^24)
            # Integer-threshold compare only; 1/(1-p) is folded into W2.
            h = jnp.where(bits >= thresh24, h, 0.0)

        # ---- layer 2: cast activation back to bf16 for the MXU ----
        o = jnp.dot(h.astype(jnp.bfloat16), w2_ref[...],
                    preferred_element_type=jnp.float32)
        out_ref[...] = (o + b2_ref[...]).astype(out_ref.dtype)

    return kernel


# ---------------------------------------------------------------------------
# Wrapper
# ---------------------------------------------------------------------------
def mlp_forward(x, params, *, p_drop=0.2, training=False, seed=0, block_b=512):
    """MLP.forward: l2(dropout(relu(l1(x)))).

    params: w1 (Din, 2*Din), b1 (2*Din,), w2 (2*Din, Dout), b2 (Dout,)
            (weights stored as (in_features, out_features), i.e. PyTorch W^T).

    NOTE: matmul operands are intentionally cast to bf16 (MXU-native) with f32
    accumulation; this deviates slightly from PyTorch's f32 nn.Linear numerics.
    """
    B, Din = x.shape
    H = params["w1"].shape[1]
    Dout = params["w2"].shape[1]
    out_dtype = x.dtype

    use_dropout = bool(training) and float(p_drop) > 0.0
    inv_keep = 1.0 / (1.0 - float(p_drop)) if float(p_drop) < 1.0 else 0.0

    # One-time weight prep (small, weight-sized passes only — activations are
    # NOT touched in the wrapper). Fold inverted-dropout scale into W2.
    w1 = params["w1"].astype(jnp.bfloat16)
    w2 = params["w2"]
    if use_dropout:
        w2 = w2 * inv_keep
    w2 = w2.astype(jnp.bfloat16)
    b1 = params["b1"].reshape(1, H).astype(jnp.float32)
    b2 = params["b2"].reshape(1, Dout).astype(jnp.float32)

    # Batch tile: large tiles amortize the ~0.35 us/step pipeline overhead.
    # A full-dim block is always legal; otherwise keep TB a multiple of 8
    # (f32 sublane).  Ragged last blocks are handled by Pallas (OOB rows of x
    # only feed OOB rows of the output, which are dropped).
    if B <= block_b:
        TB = B
    else:
        TB = max(8, (block_b // 8) * 8)
    n_blocks = pl.cdiv(B, TB)

    # VMEM budget: resident bf16 weights (count x2 for pipeline buffering),
    # f32 biases, double-buffered f32 x/out tiles, f32 hidden temporaries.
    bytes_needed = (
        2 * 2 * (Din * H + H * Dout)
        + 2 * 4 * (H + Dout)
        + 2 * 4 * TB * Din
        + 2 * 4 * TB * Dout
        + 3 * 4 * TB * H
    )
    cap = _vmem_cap_bytes()
    budget = int(cap * 0.9)
    if bytes_needed > budget:
        # TODO(synk): for very large H, stream W1/W2 over an H grid axis
        # ("arbitrary") with an f32 accumulator (pl.when init/store) instead
        # of keeping the weights VMEM-resident.
        raise ValueError(
            f"Resident-weight MLP kernel needs ~{bytes_needed} B of VMEM but "
            f"only ~{budget} B is available; reduce block_b or add H-tiling."
        )
    vmem_limit = int(min(budget, max(2 * bytes_needed, 32 * 1024 * 1024)))

    kernel = _make_mlp_kernel(use_dropout, p_drop, seed, TB, H)

    out = pl.pallas_call(
        kernel,
        out_shape=jax.ShapeDtypeStruct((B, Dout), out_dtype),
        grid=(n_blocks,),
        in_specs=[
            pl.BlockSpec((TB, Din), lambda i: (i, 0)),   # x tile (streams)
            pl.BlockSpec((Din, H), lambda i: (0, 0)),    # W1 (resident)
            pl.BlockSpec((1, H), lambda i: (0, 0)),      # b1 (resident)
            pl.BlockSpec((H, Dout), lambda i: (0, 0)),   # W2 (resident)
            pl.BlockSpec((1, Dout), lambda i: (0, 0)),   # b2 (resident)
        ],
        out_specs=pl.BlockSpec((TB, Dout), lambda i: (i, 0)),
        compiler_params=pltpu.CompilerParams(
            dimension_semantics=("parallel",),   # independent batch tiles
            vmem_limit_bytes=vmem_limit,
        ),
    )(x, w1, b1, w2, b2)
    return out


# ---------------------------------------------------------------------------
# Reference / init / test
# ---------------------------------------------------------------------------
def _mlp_reference(x, params):
    """Plain-JAX reference with the same bf16-operand / f32-accumulate numerics."""
    bf = jnp.bfloat16
    h = jnp.dot(x.astype(bf), params["w1"].astype(bf),
                preferred_element_type=jnp.float32) + params["b1"]
    h = jnp.maximum(h, 0.0)
    o = jnp.dot(h.astype(bf), params["w2"].astype(bf),
                preferred_element_type=jnp.float32) + params["b2"]
    return o.astype(x.dtype)


def _init_params(key, in_features, out_features, dtype=jnp.float32):
    """Mimics nn.Linear init: uniform(-1/sqrt(in), 1/sqrt(in)); W stored as W^T."""
    hidden = 2 * in_features
    ks = jax.random.split(key, 4)

    def lin(kw, kb, in_f, out_f):
        bound = 1.0 / (in_f ** 0.5)
        w = jax.random.uniform(kw, (in_f, out_f), dtype, -bound, bound)
        b = jax.random.uniform(kb, (out_f,), dtype, -bound, bound)
        return w, b

    w1, b1 = lin(ks[0], ks[1], in_features, hidden)
    w2, b2 = lin(ks[2], ks[3], hidden, out_features)
    return {"w1": w1, "b1": b1, "w2": w2, "b2": b2}


if __name__ == "__main__":
    key = jax.random.PRNGKey(0)
    k_x, k_x2, k_p = jax.random.split(key, 3)

    in_features, out_features = 32, 16
    params = _init_params(k_p, in_features, out_features)

    # Eval-mode check (dropout is identity in eval, as with nn.Dropout).
    x = jax.random.normal(k_x, (8, in_features), jnp.float32)
    out = mlp_forward(x, params, training=False)
    jax.block_until_ready(out)
    ref = _mlp_reference(x, params)
    assert out.shape == (8, out_features)
    assert jnp.allclose(out, ref, atol=2e-2, rtol=2e-2), "eval output mismatch"

    # Larger batch exercising the batch grid (multiple tiles, resident weights).
    x2 = jax.random.normal(k_x2, (384, in_features), jnp.float32)
    out2 = mlp_forward(x2, params, training=False, block_b=128)
    jax.block_until_ready(out2)
    ref2 = _mlp_reference(x2, params)
    assert out2.shape == (384, out_features)
    assert jnp.allclose(out2, ref2, atol=2e-2, rtol=2e-2), "tiled output mismatch"

    # Training mode: deterministic hash-based inverted dropout (different RNG
    # stream than torch, so only sanity-checked here).
    out_tr = mlp_forward(x, params, training=True, seed=0)
    jax.block_until_ready(out_tr)
    assert out_tr.shape == (8, out_features)
    assert bool(jnp.all(jnp.isfinite(out_tr)))
    assert float(jnp.max(jnp.abs(out_tr - out))) > 0.0, "dropout had no effect"

    print("KERNEL_OK")
</pallas_src>

<mosaic_0001>
module attributes {stable_mosaic.version = 11 : i64} {
  func.func @kernel(%arg0: i32, %arg1: memref<8x32xf32, #tpu.memory_space<vmem>>, %arg2: memref<32x64xbf16, #tpu.memory_space<vmem>>, %arg3: memref<1x64xf32, #tpu.memory_space<vmem>>, %arg4: memref<64x16xbf16, #tpu.memory_space<vmem>>, %arg5: memref<1x16xf32, #tpu.memory_space<vmem>>, %arg6: memref<8x16xf32, #tpu.memory_space<vmem>>) attributes {dimension_semantics = [#tpu.dimension_semantics<parallel>], iteration_bounds = array<i64: 1>, scalar_prefetch = 0 : i64, scratch_operands = 0 : i64, tpu.core_type = #tpu.core_type<tc>, window_params = [{transform_indices = @transform_0, window_bounds = array<i64: 8, 32>}, {pipeline_mode = #tpu.pipeline_mode<synchronous>, transform_indices = @transform_1, window_bounds = array<i64: 32, 64>}, {pipeline_mode = #tpu.pipeline_mode<synchronous>, transform_indices = @transform_2, window_bounds = array<i64: 1, 64>}, {pipeline_mode = #tpu.pipeline_mode<synchronous>, transform_indices = @transform_3, window_bounds = array<i64: 64, 16>}, {pipeline_mode = #tpu.pipeline_mode<synchronous>, transform_indices = @transform_4, window_bounds = array<i64: 1, 16>}, {transform_indices = @transform_5, window_bounds = array<i64: 8, 16>}]} {
    %c0 = arith.constant 0 : index
    %c0_0 = arith.constant 0 : index
    %0 = vector.load %arg1[%c0, %c0_0] : memref<8x32xf32, #tpu.memory_space<vmem>>, vector<8x32xf32>
    %1 = arith.truncf %0 : vector<8x32xf32> to vector<8x32xbf16>
    %c0_1 = arith.constant 0 : index
    %c0_2 = arith.constant 0 : index
    %2 = vector.load %arg2[%c0_1, %c0_2] : memref<32x64xbf16, #tpu.memory_space<vmem>>, vector<32x64xbf16>
    %cst = arith.constant dense<0.000000e+00> : vector<8x64xf32>
    %3 = tpu.matmul %1, %2, %cst {dimension_numbers = #tpu.dot_dimension_numbers<[1], [0], [0], [1], [0, 0, 1, 1], [], []>} : vector<8x32xbf16>, vector<32x64xbf16>, vector<8x64xf32> -> vector<8x64xf32>
    %c0_3 = arith.constant 0 : index
    %c0_4 = arith.constant 0 : index
    %4 = vector.load %arg3[%c0_3, %c0_4] : memref<1x64xf32, #tpu.memory_space<vmem>>, vector<1x64xf32>
    %5 = vector.broadcast %4 : vector<1x64xf32> to vector<8x64xf32>
    %6 = arith.addf %3, %5 : vector<8x64xf32>
    %cst_5 = arith.constant 0.000000e+00 : f32
    %7 = vector.broadcast %cst_5 : f32 to vector<8x64xf32>
    %8 = arith.maximumf %6, %7 : vector<8x64xf32>
    %9 = arith.truncf %8 : vector<8x64xf32> to vector<8x64xbf16>
    %c0_6 = arith.constant 0 : index
    %c0_7 = arith.constant 0 : index
    %10 = vector.load %arg4[%c0_6, %c0_7] : memref<64x16xbf16, #tpu.memory_space<vmem>>, vector<64x16xbf16>
    %cst_8 = arith.constant dense<0.000000e+00> : vector<8x16xf32>
    %11 = tpu.matmul %9, %10, %cst_8 {dimension_numbers = #tpu.dot_dimension_numbers<[1], [0], [0], [1], [0, 0, 1, 1], [], []>} : vector<8x64xbf16>, vector<64x16xbf16>, vector<8x16xf32> -> vector<8x16xf32>
    %c0_9 = arith.constant 0 : index
    %c0_10 = arith.constant 0 : index
    %12 = vector.load %arg5[%c0_9, %c0_10] : memref<1x16xf32, #tpu.memory_space<vmem>>, vector<1x16xf32>
    %13 = vector.broadcast %12 : vector<1x16xf32> to vector<8x16xf32>
    %14 = arith.addf %11, %13 : vector<8x16xf32>
    %c0_11 = arith.constant 0 : index
    %c0_12 = arith.constant 0 : index
    %15 = vector.load %arg6[%c0_11, %c0_12] : memref<8x16xf32, #tpu.memory_space<vmem>>, vector<8x16xf32>
    tpu.vector_store %arg6[%c0_11, %c0_12], %14 {strides = array<i32>} : memref<8x16xf32, #tpu.memory_space<vmem>>, vector<8x16xf32>,
    return
  }
  func.func @transform_0(%arg0: i32) -> (i32, i32) {
    %c0_i32 = arith.constant 0 : i32
    %c0_i32_0 = arith.constant 0 : i32
    return %arg0, %c0_i32 : i32, i32
  }
  func.func @transform_1(%arg0: i32) -> (i32, i32) {
    %c0_i32 = arith.constant 0 : i32
    %c0_i32_0 = arith.constant 0 : i32
    %c0_i32_1 = arith.constant 0 : i32
    return %c0_i32, %c0_i32_0 : i32, i32
  }
  func.func @transform_2(%arg0: i32) -> (i32, i32) {
    %c0_i32 = arith.constant 0 : i32
    %c0_i32_0 = arith.constant 0 : i32
    %c0_i32_1 = arith.constant 0 : i32
    return %c0_i32, %c0_i32_0 : i32, i32
  }
  func.func @transform_3(%arg0: i32) -> (i32, i32) {
    %c0_i32 = arith.constant 0 : i32
    %c0_i32_0 = arith.constant 0 : i32
    %c0_i32_1 = arith.constant 0 : i32
    return %c0_i32, %c0_i32_0 : i32, i32
  }
  func.func @transform_4(%arg0: i32) -> (i32, i32) {
    %c0_i32 = arith.constant 0 : i32
    %c0_i32_0 = arith.constant 0 : i32
    %c0_i32_1 = arith.constant 0 : i32
    return %c0_i32, %c0_i32_0 : i32, i32
  }
  func.func @transform_5(%arg0: i32) -> (i32, i32) {
    %c0_i32 = arith.constant 0 : i32
    %c0_i32_0 = arith.constant 0 : i32
    return %arg0, %c0_i32 : i32, i32
  }
}

</mosaic_0001>

<llo_original>
// kernel: tpu_custom_call.1
$region0: #{tpu_custom_call.1}
  #allocation0 [shape = 'u32[]', space=smem, size = 0x4, offset = 0x4, fixed_abs, tag = 'smem constant byte address 0x4 - core index']
  #allocation1 [shape = 'u32[144,128]{1,0:T(1,128)}', space=vmem, size = 0x12000, scoped, tag = 'internal scratch']
  %s0 = inlined_call_operand.vmem [shape: f32[8,32], index: 0, kind: input, shape index: {}]
  %s1 = inlined_call_operand.vmem [shape: bf16[32,64], index: 1, kind: input, shape index: {}]
  %s2 = inlined_call_operand.vmem [shape: f32[1,64], index: 2, kind: input, shape index: {}]
  %s3 = inlined_call_operand.vmem [shape: bf16[64,16], index: 3, kind: input, shape index: {}]
  %s4 = inlined_call_operand.vmem [shape: f32[1,16], index: 4, kind: input, shape index: {}]
  %s5 = inlined_call_operand.hbm [shape: f32[8,16], index: 5, kind: output, shape index: {}]
  %s6 = sld [smem:[#allocation0]]
  $region30: #{tpu_custom_call.1} parent=0
    _
  %s8 = ssub.s32 1, %s6
  %s9 = scalar_select 0, %s8, %s6
  $region1: #{tpu_custom_call.1} parent=0
    #allocation2 [shape = 'u8[4096]{0}', space=vmem, size = 0x1000, scoped, tag = 'output window, operand 0, single buffered']
    #allocation3 [shape = 's32[1]{0}', space=sflag, size = 0x4, scoped, tag = 'scoped memory for tpu_custom_call.1']
    %10 = vsyncpa [#allocation3], 0
    // Predicated region
    $region2: #{tpu_custom_call.1} parent=1 // pred_check
      _
    $region3: #{tpu_custom_call.1} parent=1 // pred_check_branch
      %12 = sbr.rel (0) target = $region5
    $region4: #{tpu_custom_call.1} parent=1 // pred_region
      _
    $region5: #{tpu_custom_call.1} parent=1 // pred_fallthru
      _
    // Predicated region
    $region6: #{tpu_custom_call.1} parent=1 // pred_check
      _
    $region7: #{tpu_custom_call.1} parent=1 // pred_check_branch
      %14 = sbr.rel (0) target = $region9
    $region8: #{tpu_custom_call.1} parent=1 // pred_region
      _
    $region9: #{tpu_custom_call.1} parent=1 // pred_fallthru
      _
    // Predicated region
    $region10: #{tpu_custom_call.1} parent=1 // pred_check
      _
    $region11: #{tpu_custom_call.1} parent=1 // pred_check_branch
      %16 = sbr.rel (0) target = $region13
    $region12: #{tpu_custom_call.1} parent=1 // pred_region
      _
    $region13: #{tpu_custom_call.1} parent=1 // pred_fallthru
      _
    // Predicated region
    $region14: #{tpu_custom_call.1} parent=1 // pred_check
      _
    $region15: #{tpu_custom_call.1} parent=1 // pred_check_branch
      %18 = sbr.rel (0) target = $region17
    $region16: #{tpu_custom_call.1} parent=1 // pred_region
      _
    $region17: #{tpu_custom_call.1} parent=1 // pred_fallthru
      _
    // Predicated region
    $region18: #{tpu_custom_call.1} parent=1 // pred_check
      _
    $region19: #{tpu_custom_call.1} parent=1 // pred_check_branch
      %20 = sbr.rel (0) target = $region21
    $region20: #{tpu_custom_call.1} parent=1 // pred_region
      _
    $region21: #{tpu_custom_call.1} parent=1 // pred_fallthru
      _
    %v22 = vld [vmem:[%s0] sm:$0xff]
    %v23 = vpack.c.bf16 %v22, %v22
    %v24 = vld [vmem:[%s1] sm:$0xf]
    %v25 = vld [vmem:[%s1 + $0x4] sm:$0xf]
    %v26 = vld [vmem:[%s1 + $0x8] sm:$0xf]
    %v27 = vld [vmem:[%s1 + $0xc] sm:$0xf]
    %v28 = vld [vmem:[%s2] sm:$0x1]
    %v30 = vlaneseq
    %v31 = vshrl.u32 %v30, 7
    %v32 = vsub.s32 0, %v31
    %v33 = vrot.slane %v28, %v32
    %v39 = vunpack.c.l.b16 %v24
    %v40 = vunpack.c.l.b16 %v25
    %v41 = vunpack.c.l.b16 %v26
    %v42 = vunpack.c.l.b16 %v27
    %v43 = vpack.c.b16 %v40, %v39
    %v44 = vpack.c.b16 %v42, %v41
    %vm47 = vcmask 261120
    %v49 = vsel %vm47, %v23, 0
    %51 = vmatprep.subr.bf16.mxu0 0
    %52 = vmatpush1.bf16.msra.mxu0 %v43
    %53 = vmatprep.subr.bf16.mxu0 0
    %54 = vmatpush1.bf16.msra.mxu0 %v44
    %55 = vmatprep.subr.bf16.mxu0 0
    %56 = vmatpush1.bf16.msra.mxu0 0
    %57 = vmatprep.subr.bf16.mxu0 0
    %58 = vmatpush1.bf16.msra.mxu0 0
    %59 = vmatprep.subr.bf16.mxu0 0
    %60 = vmatpush1.bf16.msra.mxu0 0
    %61 = vmatprep.subr.bf16.mxu0 0
    %62 = vmatpush1.bf16.msra.mxu0 0
    %63 = vmatprep.subr.bf16.mxu0 0
    %64 = vmatpush1.bf16.msra.mxu0 0
    %65 = vmatprep.subr.bf16.mxu0 0
    %66 = vmatpush1.bf16.msra.mxu0 0
    %67 = vmatprep.subr.bf16.mxu0 0
    %68 = vmatpush1.bf16.msra.mxu0 0
    %69 = vmatprep.subr.bf16.mxu0 0
    %70 = vmatpush1.bf16.msra.mxu0 0
    %71 = vmatprep.subr.bf16.mxu0 0
    %72 = vmatpush1.bf16.msra.mxu0 0
    %73 = vmatprep.subr.bf16.mxu0 0
    %74 = vmatpush1.bf16.msra.mxu0 0
    %75 = vmatprep.subr.bf16.mxu0 0
    %76 = vmatpush1.bf16.msra.mxu0 0
    %77 = vmatprep.subr.bf16.mxu0 0
    %78 = vmatpush1.bf16.msra.mxu0 0
    %79 = vmatprep.subr.bf16.mxu0 0
    %80 = vmatpush1.bf16.msra.mxu0 0
    %81 = vmatprep.subr.bf16.mxu0 0
    %82 = vmatpush1.bf16.msra.mxu0 0
    %83 = vmatprep.mubr.bf16.mxu0 0
    %84 = vmatmul.mubr.bf16.gmra.mrb[0].mxu0 %v49
    %v85 = vpop.f32.mrb[0].mxu0
    %v86 = vadd.f32 %v33, %v85
    %v87 = vpop.f32.mrb[0].mxu0
    %v88 = vpop.f32.mrb[0].mxu0
    %v89 = vpop.f32.mrb[0].mxu0
    %90 = vdwg.mxu0
    %v91 = vmax.f32 %v86, 0.0
    %v92 = vpack.c.bf16 %v91, %v91
    %v93 = vld [vmem:[%s3] sm:$0xf]
    %v94 = vld [vmem:[%s3 + $0x4] sm:$0xf]
    %v95 = vld [vmem:[%s3 + $0x8] sm:$0xf]
    %v96 = vld [vmem:[%s3 + $0xc] sm:$0xf]
    %v97 = vld [vmem:[%s3 + $0x10] sm:$0xf]
    %v98 = vld [vmem:[%s3 + $0x14] sm:$0xf]
    %v99 = vld [vmem:[%s3 + $0x18] sm:$0xf]
    %v100 = vld [vmem:[%s3 + $0x1c] sm:$0xf]
    %v101 = vld [vmem:[%s4] sm:$0x1]
    %v103 = vlaneseq
    %v104 = vshrl.u32 %v103, 7
    %v105 = vsub.s32 0, %v104
    %v106 = vrot.slane %v101, %v105
    %v116 = vunpack.c.l.b16 %v93
    %v117 = vunpack.c.l.b16 %v94
    %v118 = vunpack.c.l.b16 %v95
    %v119 = vunpack.c.l.b16 %v96
    %v120 = vunpack.c.l.b16 %v97
    %v121 = vunpack.c.l.b16 %v98
    %v122 = vunpack.c.l.b16 %v99
    %v123 = vunpack.c.l.b16 %v100
    %v124 = vpack.c.b16 %v117, %v116
    %v125 = vpack.c.b16 %v119, %v118
    %v126 = vpack.c.b16 %v121, %v120
    %v127 = vpack.c.b16 %v123, %v122
    %vm132 = vcmask 523264
    %v134 = vsel %vm132, %v92, 0
    %136 = vmatprep.subr.bf16.mxu0 0
    %137 = vmatpush1.bf16.msra.mxu0 %v124
    %138 = vmatprep.subr.bf16.mxu0 0
    %139 = vmatpush1.bf16.msra.mxu0 %v125
    %140 = vmatprep.subr.bf16.mxu0 0
    %141 = vmatpush1.bf16.msra.mxu0 %v126
    %142 = vmatprep.subr.bf16.mxu0 0
    %143 = vmatpush1.bf16.msra.mxu0 %v127
    %144 = vmatprep.subr.bf16.mxu0 0
    %145 = vmatpush1.bf16.msra.mxu0 0
    %146 = vmatprep.subr.bf16.mxu0 0
    %147 = vmatpush1.bf16.msra.mxu0 0
    %148 = vmatprep.subr.bf16.mxu0 0
    %149 = vmatpush1.bf16.msra.mxu0 0
    %150 = vmatprep.subr.bf16.mxu0 0
    %151 = vmatpush1.bf16.msra.mxu0 0
    %152 = vmatprep.subr.bf16.mxu0 0
    %153 = vmatpush1.bf16.msra.mxu0 0
    %154 = vmatprep.subr.bf16.mxu0 0
    %155 = vmatpush1.bf16.msra.mxu0 0
    %156 = vmatprep.subr.bf16.mxu0 0
    %157 = vmatpush1.bf16.msra.mxu0 0
    %158 = vmatprep.subr.bf16.mxu0 0
    %159 = vmatpush1.bf16.msra.mxu0 0
    %160 = vmatprep.subr.bf16.mxu0 0
    %161 = vmatpush1.bf16.msra.mxu0 0
    %162 = vmatprep.subr.bf16.mxu0 0
    %163 = vmatpush1.bf16.msra.mxu0 0
    %164 = vmatprep.subr.bf16.mxu0 0
    %165 = vmatpush1.bf16.msra.mxu0 0
    %166 = vmatprep.subr.bf16.mxu0 0
    %167 = vmatpush1.bf16.msra.mxu0 0
    %168 = vmatprep.mubr.bf16.mxu0 0
    %169 = vmatmul.mubr.bf16.gmra.mrb[0].mxu0 %v134
    %v170 = vpop.f32.mrb[0].mxu0
    %v171 = vadd.f32 %v106, %v170
    %v172 = vpop.f32.mrb[0].mxu0
    %v173 = vpop.f32.mrb[0].mxu0
    %v174 = vpop.f32.mrb[0].mxu0
    %175 = vdwg.mxu0
    %vm176 = vcmask 130048
    %177 = vst.msk [vmem:[#allocation2] sm:$0xff] %vm176, %v171
    // Predicated region
    $region22: #{tpu_custom_call.1} parent=1 // pred_check
      _
    $region23: #{tpu_custom_call.1} parent=1 // pred_check_branch
      %179 = sbr.rel (0) target = $region25
    $region24: #{tpu_custom_call.1} parent=1 // pred_region
      %s181 = ssub.s32 128, 128
      %182 = vsyncadd [#allocation3], %s181
      %s184 = sshll.u32 [#allocation2], 4
      %s185 = int_to_ptr.vmem [resolvable:$true] %s184
      %187 = dma.vmem_to_hbm [thread:$0]  %s185, 128, %s5, [#allocation3]
    $region25: #{tpu_custom_call.1} parent=1 // pred_fallthru
      _
    // Predicated region
    $region26: #{tpu_custom_call.1} parent=1 // pred_check
      _
    $region27: #{tpu_custom_call.1} parent=1 // pred_check_branch
      %189 = sbr.rel (0) target = $region29
    $region28: #{tpu_custom_call.1} parent=1 // pred_region
      %190 = dma.done [#allocation3], 128
    $region29: #{tpu_custom_call.1} parent=1 // pred_fallthru
      _
    %191 = vsyncpa [#allocation3], 1

</llo_original>
